<compile_context>
chip_gen: v6e
topology: v6e:2x2x1
jax: 0.10.0
libtpu: 0.0.40
codegen_flags: <defaults>
</compile_context>

<pallas_src>
import jax
import jax.numpy as jnp
from jax.experimental import pallas as pl
from jax.experimental.pallas import tpu as pltpu


# ------------------------------ small helpers -------------------------------

def _round_up(x, m):
    return ((x + m - 1) // m) * m


def _pad_last(a, multiple):
    """Zero-pad the last dim of `a` up to a multiple of `multiple`."""
    n = a.shape[-1]
    pad = (-n) % multiple
    if pad:
        a = jnp.pad(a, [(0, 0)] * (a.ndim - 1) + [(0, pad)])
    return a


# ----------------------------- Pallas kernels ------------------------------

def _linear_kernel(x_ref, w_ref, b_ref, o_ref):
    # (tm, K) @ (K, N) + (1, N), bf16 MXU inputs, f32 accumulate.
    xb = x_ref[...].astype(jnp.bfloat16)
    acc = jnp.dot(xb, w_ref[...], preferred_element_type=jnp.float32)
    o_ref[...] = (acc + b_ref[...]).astype(o_ref.dtype)


def pallas_linear(x, w, b, *, tile_m=256):
    """x: (M, K) @ w: (K, N) + b: (N,). Used for the 1x1 conv `input_proj`."""
    M, K = x.shape
    N = w.shape[1]
    tile_m = min(tile_m, _round_up(M, 8))       # bounded tile; ragged last block OK
    grid = (pl.cdiv(M, tile_m),)
    w_bf16 = w.astype(jnp.bfloat16)             # halve weight DMA traffic
    return pl.pallas_call(
        _linear_kernel,
        out_shape=jax.ShapeDtypeStruct((M, N), jnp.float32),
        grid_spec=pltpu.PrefetchScalarGridSpec(
            num_scalar_prefetch=0,
            grid=grid,
            in_specs=[
                pl.BlockSpec((tile_m, K), lambda i: (i, 0)),
                pl.BlockSpec((K, N), lambda i: (0, 0)),
                pl.BlockSpec((1, N), lambda i: (0, 0)),
            ],
            out_specs=pl.BlockSpec((tile_m, N), lambda i: (i, 0)),
        ),
        compiler_params=pltpu.CompilerParams(dimension_semantics=("parallel",)),
    )(x, w_bf16, b.reshape(1, N))


_BOX_LANES = 128  # lane-dense slab for the 4-wide bbox output


def _head_kernel(x_ref, wobj_ref, bobj_ref, w1_ref, b1_ref, w2_ref, b2_ref,
                 w3_ref, b3_ref, logits_ref, boxes_ref):
    """Fused obj_class_embed linear + bbox MLP (Linear-ReLU-Linear-ReLU-Linear) + sigmoid.

    Grid is (row_tiles, noun_tiles).  Logits are produced per (i, j) tile; the
    bbox MLP only depends on x so it runs once per row tile (j == 0) into a
    lane-dense 128-wide output slab.
    """
    xb = x_ref[...].astype(jnp.bfloat16)
    logits_ref[...] = (
        jnp.dot(xb, wobj_ref[...], preferred_element_type=jnp.float32)
        + bobj_ref[...]
    )

    @pl.when(pl.program_id(1) == 0)
    def _():
        h = jnp.dot(xb, w1_ref[...], preferred_element_type=jnp.float32) + b1_ref[...]
        h = jnp.maximum(h, 0.0).astype(jnp.bfloat16)
        h = jnp.dot(h, w2_ref[...], preferred_element_type=jnp.float32) + b2_ref[...]
        h = jnp.maximum(h, 0.0).astype(jnp.bfloat16)
        bx = jnp.dot(h, w3_ref[...], preferred_element_type=jnp.float32) + b3_ref[...]
        boxes_ref[...] = jax.nn.sigmoid(bx)


def pallas_heads(x, obj_w, obj_b, w1, b1, w2, b2, w3, b3, *,
                 tile_m=256, tile_n=128):
    """x: (M, D) -> (logits (M, num_nouns), boxes (M, 4)).

    Tiled over rows (parallel) and over the padded noun axis (arbitrary; the
    bbox output block stays resident across it).
    """
    M, D = x.shape
    N = obj_w.shape[1]
    N_pad = _round_up(N, tile_n)
    tile_m = min(tile_m, _round_up(M, 8))
    grid = (pl.cdiv(M, tile_m), N_pad // tile_n)

    # bf16 weights (MXU inputs), f32 biases (epilogue stays f32).
    obj_w_p = _pad_last(obj_w, tile_n).astype(jnp.bfloat16)      # (D, N_pad)
    obj_b_p = _pad_last(obj_b.reshape(1, -1), tile_n)            # (1, N_pad)
    w3_p = _pad_last(w3, _BOX_LANES).astype(jnp.bfloat16)        # (D, 128)
    b3_p = _pad_last(b3.reshape(1, -1), _BOX_LANES)              # (1, 128)
    w1b = w1.astype(jnp.bfloat16)
    w2b = w2.astype(jnp.bfloat16)

    logits_p, boxes_p = pl.pallas_call(
        _head_kernel,
        out_shape=(
            jax.ShapeDtypeStruct((M, N_pad), jnp.float32),
            jax.ShapeDtypeStruct((M, _BOX_LANES), jnp.float32),
        ),
        grid_spec=pltpu.PrefetchScalarGridSpec(
            num_scalar_prefetch=0,
            grid=grid,
            in_specs=[
                pl.BlockSpec((tile_m, D), lambda i, j: (i, 0)),          # x
                pl.BlockSpec((D, tile_n), lambda i, j: (0, j)),          # obj_w tile
                pl.BlockSpec((1, tile_n), lambda i, j: (0, j)),          # obj_b tile
                pl.BlockSpec((D, D), lambda i, j: (0, 0)),               # w1 (resident)
                pl.BlockSpec((1, D), lambda i, j: (0, 0)),               # b1
                pl.BlockSpec((D, D), lambda i, j: (0, 0)),               # w2 (resident)
                pl.BlockSpec((1, D), lambda i, j: (0, 0)),               # b2
                pl.BlockSpec((D, _BOX_LANES), lambda i, j: (0, 0)),      # w3 (padded)
                pl.BlockSpec((1, _BOX_LANES), lambda i, j: (0, 0)),      # b3 (padded)
            ],
            out_specs=(
                pl.BlockSpec((tile_m, tile_n), lambda i, j: (i, j)),     # logits
                pl.BlockSpec((tile_m, _BOX_LANES), lambda i, j: (i, 0)), # boxes (resident over j)
            ),
        ),
        compiler_params=pltpu.CompilerParams(
            dimension_semantics=("parallel", "arbitrary")),
    )(
        x,
        obj_w_p, obj_b_p,
        w1b, b1.reshape(1, -1),
        w2b, b2.reshape(1, -1),
        w3_p, b3_p,
    )
    return logits_p[:, :N], boxes_p[:, :4]


# ------------------------- transformer / backbone stand-ins -----------------

def _standin_transformer(tparams, src_proj, mask, dec_input, pos, verb_role_mask):
    # TODO(synk): the real `transformer` (and `backbone`) are externally injected
    # nn.Modules not defined in models/gsr.py; this is a deterministic single-head
    # cross-attention decoder stand-in that reproduces the expected interface:
    # returns hs of shape (L, B, Q, D) and memory of shape (B, HW, D).
    B, D, H, W = src_proj.shape
    memory = src_proj.reshape(B, D, H * W).transpose(0, 2, 1)   # (B, HW, D)
    posf = pos.reshape(B, D, H * W).transpose(0, 2, 1)          # (B, HW, D)
    q = dec_input.transpose(1, 0, 2)                            # (B, Q, D)
    key_mask = mask.reshape(B, H * W)                           # True == padded pixel
    scale = 1.0 / jnp.sqrt(jnp.float32(D))
    hs = []
    for (wq, wk, wv, wo) in tparams["layers"]:
        qq = q @ wq
        kk = (memory + posf) @ wk
        vv = memory @ wv
        att = jnp.einsum("bqd,bkd->bqk", qq, kk) * scale
        att = jnp.where(key_mask[:, None, :], -1e9, att)
        att = jax.nn.softmax(att, axis=-1)
        q = q + jnp.einsum("bqk,bkd->bqd", att, vv) @ wo
        q = jnp.where(verb_role_mask[:, :, None], 0.0, q)       # mask invalid role queries
        hs.append(q)
    return jnp.stack(hs, axis=0), memory


# ------------------------------- GSR forward --------------------------------

def gsr_forward(params, src, mask, pos, gt_verb, use_verb=True):
    """src: (B, Cin, H, W) NCHW backbone feature, mask: (B, H, W) bool,
    pos: (B, D, H, W) positional encoding, gt_verb: (B,) int32."""
    B, Cin, H, W = src.shape
    D = params["hidden_dim"]

    # ---- input_proj: 1x1 conv as Pallas matmul over flattened pixels ----
    x = jnp.transpose(src, (0, 2, 3, 1)).reshape(B * H * W, Cin)     # NCHW -> (BHW, Cin)
    proj = pallas_linear(x, params["input_proj_w"], params["input_proj_b"], tile_m=256)
    src_proj = proj.reshape(B, H, W, D).transpose(0, 3, 1, 2)        # back to NCHW

    # ---- embeddings / role bookkeeping (glue) ----
    verb_roles_embedding = params["verb_roles"][gt_verb]             # (B, R) int
    verb_role_mask = params["role_mask"][gt_verb].astype(bool)       # (B, R)
    pad_role_mask = jnp.zeros((verb_role_mask.shape[0], 1), dtype=bool)
    verb_role_mask = jnp.concatenate([pad_role_mask, verb_role_mask], axis=1)  # (B, 1+R)
    dec_role_embed = params["role_emb"][verb_roles_embedding]        # (B, R, D)
    if use_verb:
        dec_verb_emb = params["verb_emb"][gt_verb][:, None, :]       # (B, 1, D)
        dec_input = jnp.concatenate([dec_verb_emb, dec_role_embed], axis=1)
    else:
        dec_input = dec_role_embed
    dec_input = jnp.transpose(dec_input, (1, 0, 2))                  # (Q, B, D)

    hs, _memory = _standin_transformer(
        params["transformer"], src_proj, mask, dec_input, pos, verb_role_mask)

    dec_role_feat = hs[:, :, 1:, :] if use_verb else hs              # (L, B, R, D)
    L, B_, R, _ = dec_role_feat.shape
    flat = dec_role_feat.reshape(L * B_ * R, D)

    # ---- fused prediction heads in one Pallas kernel ----
    logits, boxes = pallas_heads(
        flat,
        params["obj_w"], params["obj_b"],
        params["mlp_w1"], params["mlp_b1"],
        params["mlp_w2"], params["mlp_b2"],
        params["mlp_w3"], params["mlp_b3"],
    )
    outputs_obj_class = logits.reshape(L, B_, R, -1).transpose(0, 1, 3, 2)  # (L,B,nouns,R)
    outputs_coord = boxes.reshape(L, B_, R, 4)                              # (L,B,R,4)
    return {
        "pred_obj_logits": outputs_obj_class[-1],
        "pred_boxes": outputs_coord[-1],
    }


# ----------------------------- deterministic init ---------------------------

def init_params(key, *, cin, hidden, num_nouns, num_verbs, num_roles, max_roles,
                num_dec_layers):
    keys = jax.random.split(key, 16)

    def lin(k, fan_in, shape):
        return (jax.random.normal(k, shape, jnp.float32) / jnp.sqrt(jnp.float32(fan_in)))

    p = {"hidden_dim": hidden}
    p["input_proj_w"] = lin(keys[0], cin, (cin, hidden))
    p["input_proj_b"] = jnp.zeros((hidden,), jnp.float32)
    p["verb_emb"] = 0.02 * jax.random.normal(keys[1], (num_verbs, hidden), jnp.float32)
    role_emb = 0.02 * jax.random.normal(keys[2], (num_roles + 1, hidden), jnp.float32)
    p["role_emb"] = role_emb.at[num_roles].set(0.0)                  # padding_idx row
    p["obj_w"] = lin(keys[3], hidden, (hidden, num_nouns))
    p["obj_b"] = jnp.zeros((num_nouns,), jnp.float32)
    p["mlp_w1"] = lin(keys[4], hidden, (hidden, hidden))
    p["mlp_b1"] = jnp.zeros((hidden,), jnp.float32)
    p["mlp_w2"] = lin(keys[5], hidden, (hidden, hidden))
    p["mlp_b2"] = jnp.zeros((hidden,), jnp.float32)
    p["mlp_w3"] = lin(keys[6], hidden, (hidden, 4))
    p["mlp_b3"] = jnp.zeros((4,), jnp.float32)

    # registered buffers
    vr = jax.random.randint(keys[7], (num_verbs, max_roles), 0, num_roles)
    pad_pattern = jax.random.bernoulli(keys[8], 0.3, (num_verbs, max_roles))
    vr = jnp.where(pad_pattern, num_roles, vr).astype(jnp.int32)
    p["verb_roles"] = vr
    p["role_mask"] = (vr == num_roles).astype(jnp.float32)

    # stand-in transformer weights
    layers = []
    for l in range(num_dec_layers):
        lk = jax.random.split(keys[9 + l], 4)
        layers.append(tuple(lin(lk[i], hidden, (hidden, hidden)) for i in range(4)))
    p["transformer"] = {"layers": layers}
    return p


# ----------------------------------- main ------------------------------------

if __name__ == "__main__":
    B, Cin, H, W = 2, 64, 8, 8          # backbone.num_channels = 64 (small synthetic)
    hidden = 64                          # transformer.d_model
    num_nouns, num_verbs, num_roles, max_roles = 32, 16, 10, 6
    num_dec_layers = 3

    key = jax.random.PRNGKey(0)
    k_param, k_src, k_pos, k_verb = jax.random.split(key, 4)

    params = init_params(
        k_param, cin=Cin, hidden=hidden, num_nouns=num_nouns, num_verbs=num_verbs,
        num_roles=num_roles, max_roles=max_roles, num_dec_layers=num_dec_layers)

    src = jax.random.normal(k_src, (B, Cin, H, W), jnp.float32)      # features[-1] (NCHW)
    pos = jax.random.normal(k_pos, (B, hidden, H, W), jnp.float32)   # pos[-1]
    mask = jnp.zeros((B, H, W), dtype=bool)                          # no padded pixels
    gt_verb = jax.random.randint(k_verb, (B,), 0, num_verbs).astype(jnp.int32)

    out = gsr_forward(params, src, mask, pos, gt_verb, use_verb=True)
    jax.block_until_ready(out)

    assert out["pred_obj_logits"].shape == (B, num_nouns, max_roles)
    assert out["pred_boxes"].shape == (B, max_roles, 4)
    assert bool(jnp.all(out["pred_boxes"] >= 0.0) & jnp.all(out["pred_boxes"] <= 1.0))
    print("KERNEL_OK")
</pallas_src>

<mosaic_0001>
module attributes {stable_mosaic.version = 11 : i64} {
  func.func @_linear_kernel(%arg0: i32, %arg1: memref<128x64xf32, #tpu.memory_space<vmem>>, %arg2: memref<64x64xbf16, #tpu.memory_space<vmem>>, %arg3: memref<1x64xf32, #tpu.memory_space<vmem>>, %arg4: memref<128x64xf32, #tpu.memory_space<vmem>>) attributes {dimension_semantics = [#tpu.dimension_semantics<parallel>], iteration_bounds = array<i64: 1>, scalar_prefetch = 0 : i64, scratch_operands = 0 : i64, tpu.core_type = #tpu.core_type<tc>, window_params = [{transform_indices = @transform_0, window_bounds = array<i64: 128, 64>}, {pipeline_mode = #tpu.pipeline_mode<synchronous>, transform_indices = @transform_1, window_bounds = array<i64: 64, 64>}, {pipeline_mode = #tpu.pipeline_mode<synchronous>, transform_indices = @transform_2, window_bounds = array<i64: 1, 64>}, {transform_indices = @transform_3, window_bounds = array<i64: 128, 64>}]} {
    %c0 = arith.constant 0 : index
    %c0_0 = arith.constant 0 : index
    %0 = vector.load %arg1[%c0, %c0_0] : memref<128x64xf32, #tpu.memory_space<vmem>>, vector<128x64xf32>
    %1 = arith.truncf %0 : vector<128x64xf32> to vector<128x64xbf16>
    %c0_1 = arith.constant 0 : index
    %c0_2 = arith.constant 0 : index
    %2 = vector.load %arg2[%c0_1, %c0_2] : memref<64x64xbf16, #tpu.memory_space<vmem>>, vector<64x64xbf16>
    %cst = arith.constant dense<0.000000e+00> : vector<128x64xf32>
    %3 = tpu.matmul %1, %2, %cst {dimension_numbers = #tpu.dot_dimension_numbers<[1], [0], [0], [1], [0, 0, 1, 1], [], []>} : vector<128x64xbf16>, vector<64x64xbf16>, vector<128x64xf32> -> vector<128x64xf32>
    %c0_3 = arith.constant 0 : index
    %c0_4 = arith.constant 0 : index
    %4 = vector.load %arg3[%c0_3, %c0_4] : memref<1x64xf32, #tpu.memory_space<vmem>>, vector<1x64xf32>
    %5 = vector.broadcast %4 : vector<1x64xf32> to vector<128x64xf32>
    %6 = arith.addf %3, %5 : vector<128x64xf32>
    %c0_5 = arith.constant 0 : index
    %c0_6 = arith.constant 0 : index
    %7 = vector.load %arg4[%c0_5, %c0_6] : memref<128x64xf32, #tpu.memory_space<vmem>>, vector<128x64xf32>
    tpu.vector_store %arg4[%c0_5, %c0_6], %6 {strides = array<i32>} : memref<128x64xf32, #tpu.memory_space<vmem>>, vector<128x64xf32>,
    return
  }
  func.func @transform_0(%arg0: i32) -> (i32, i32) {
    %c0_i32 = arith.constant 0 : i32
    %c0_i32_0 = arith.constant 0 : i32
    return %arg0, %c0_i32 : i32, i32
  }
  func.func @transform_1(%arg0: i32) -> (i32, i32) {
    %c0_i32 = arith.constant 0 : i32
    %c0_i32_0 = arith.constant 0 : i32
    %c0_i32_1 = arith.constant 0 : i32
    return %c0_i32, %c0_i32_0 : i32, i32
  }
  func.func @transform_2(%arg0: i32) -> (i32, i32) {
    %c0_i32 = arith.constant 0 : i32
    %c0_i32_0 = arith.constant 0 : i32
    %c0_i32_1 = arith.constant 0 : i32
    return %c0_i32, %c0_i32_0 : i32, i32
  }
  func.func @transform_3(%arg0: i32) -> (i32, i32) {
    %c0_i32 = arith.constant 0 : i32
    %c0_i32_0 = arith.constant 0 : i32
    return %arg0, %c0_i32 : i32, i32
  }
}

</mosaic_0001>

<llo_original>
// kernel: tpu_custom_call.1
$region0: #{tpu_custom_call.1}
  #allocation0 [shape = 'u32[]', space=smem, size = 0x4, offset = 0x4, fixed_abs, tag = 'smem constant byte address 0x4 - core index']
  #allocation1 [shape = 'u32[144,128]{1,0:T(1,128)}', space=vmem, size = 0x12000, scoped, tag = 'internal scratch']
  %s0 = inlined_call_operand.vmem [shape: f32[128,64], index: 0, kind: input, shape index: {}]
  %s1 = inlined_call_operand.vmem [shape: bf16[64,64], index: 1, kind: input, shape index: {}]
  %s2 = inlined_call_operand.vmem [shape: f32[1,64], index: 2, kind: input, shape index: {}]
  %s3 = inlined_call_operand.vmem [shape: f32[128,64], index: 3, kind: output, shape index: {}]
  %s4 = sld [smem:[#allocation0]]
  $region22: #{tpu_custom_call.1} parent=0
    _
  %s6 = ssub.s32 1, %s4
  %s7 = scalar_select 0, %s6, %s4
  // Predicated region
  $region2: #{tpu_custom_call.1} parent=0 // pred_check
    _
  $region3: #{tpu_custom_call.1} parent=0 // pred_check_branch
    %9 = sbr.rel (0) target = $region5
  $region4: #{tpu_custom_call.1} parent=0 // pred_region
    _
  $region5: #{tpu_custom_call.1} parent=0 // pred_fallthru
    _
  // Predicated region
  $region6: #{tpu_custom_call.1} parent=0 // pred_check
    _
  $region7: #{tpu_custom_call.1} parent=0 // pred_check_branch
    %11 = sbr.rel (0) target = $region9
  $region8: #{tpu_custom_call.1} parent=0 // pred_region
    _
  $region9: #{tpu_custom_call.1} parent=0 // pred_fallthru
    _
  // Predicated region
  $region10: #{tpu_custom_call.1} parent=0 // pred_check
    _
  $region11: #{tpu_custom_call.1} parent=0 // pred_check_branch
    %13 = sbr.rel (0) target = $region13
  $region12: #{tpu_custom_call.1} parent=0 // pred_region
    _
  $region13: #{tpu_custom_call.1} parent=0 // pred_fallthru
    _
  %v15 = vld [vmem:[%s0] sm:$0xff]
  %v16 = vld [vmem:[%s0 + $0x8] sm:$0xff]
  %v17 = vld [vmem:[%s0 + $0x10] sm:$0xff]
  %v18 = vld [vmem:[%s0 + $0x18] sm:$0xff]
  %v19 = vld [vmem:[%s0 + $0x20] sm:$0xff]
  %v20 = vld [vmem:[%s0 + $0x28] sm:$0xff]
  %v21 = vld [vmem:[%s0 + $0x30] sm:$0xff]
  %v22 = vld [vmem:[%s0 + $0x38] sm:$0xff]
  %v23 = vld [vmem:[%s0 + $0x40] sm:$0xff]
  %v24 = vld [vmem:[%s0 + $0x48] sm:$0xff]
  %v25 = vld [vmem:[%s0 + $0x50] sm:$0xff]
  %v26 = vld [vmem:[%s0 + $0x58] sm:$0xff]
  %v27 = vld [vmem:[%s0 + $0x60] sm:$0xff]
  %v28 = vld [vmem:[%s0 + $0x68] sm:$0xff]
  %v29 = vld [vmem:[%s0 + $0x70] sm:$0xff]
  %v30 = vld [vmem:[%s0 + $0x78] sm:$0xff]
  %v31 = vpack.c.bf16 %v16, %v15
  %v32 = vpack.c.bf16 %v18, %v17
  %v33 = vpack.c.bf16 %v20, %v19
  %v34 = vpack.c.bf16 %v22, %v21
  %v35 = vpack.c.bf16 %v24, %v23
  %v36 = vpack.c.bf16 %v26, %v25
  %v37 = vpack.c.bf16 %v28, %v27
  %v38 = vpack.c.bf16 %v30, %v29
  %v39 = vld [vmem:[%s1] sm:$0xf]
  %v40 = vld [vmem:[%s1 + $0x4] sm:$0xf]
  %v41 = vld [vmem:[%s1 + $0x8] sm:$0xf]
  %v42 = vld [vmem:[%s1 + $0xc] sm:$0xf]
  %v43 = vld [vmem:[%s1 + $0x10] sm:$0xf]
  %v44 = vld [vmem:[%s1 + $0x14] sm:$0xf]
  %v45 = vld [vmem:[%s1 + $0x18] sm:$0xf]
  %v46 = vld [vmem:[%s1 + $0x1c] sm:$0xf]
  %v47 = vld [vmem:[%s2] sm:$0x1]
  %v49 = vlaneseq
  %v50 = vshrl.u32 %v49, 7
  %v51 = vsub.s32 0, %v50
  %v52 = vrot.slane %v47, %v51
  %v62 = vunpack.c.l.b16 %v39
  %v63 = vunpack.c.l.b16 %v40
  %v64 = vunpack.c.l.b16 %v41
  %v65 = vunpack.c.l.b16 %v42
  %v66 = vunpack.c.l.b16 %v43
  %v67 = vunpack.c.l.b16 %v44
  %v68 = vunpack.c.l.b16 %v45
  %v69 = vunpack.c.l.b16 %v46
  %v70 = vpack.c.b16 %v63, %v62
  %v71 = vpack.c.b16 %v65, %v64
  %v72 = vpack.c.b16 %v67, %v66
  %v73 = vpack.c.b16 %v69, %v68
  %vm78 = vcmask 523264
  %v80 = vsel %vm78, %v31, 0
  %v83 = vsel %vm78, %v32, 0
  %v86 = vsel %vm78, %v33, 0
  %v89 = vsel %vm78, %v34, 0
  %v92 = vsel %vm78, %v35, 0
  %v95 = vsel %vm78, %v36, 0
  %v98 = vsel %vm78, %v37, 0
  %v101 = vsel %vm78, %v38, 0
  %103 = vmatprep.subr.bf16.mxu0 0
  %104 = vmatpush1.bf16.msra.mxu0 0
  %105 = vmatprep.subr.bf16.mxu0 0
  %106 = vmatpush1.bf16.msra.mxu0 0
  %107 = vmatprep.subr.bf16.mxu0 0
  %108 = vmatpush1.bf16.msra.mxu0 0
  %109 = vmatprep.subr.bf16.mxu0 0
  %110 = vmatpush1.bf16.msra.mxu0 0
  %111 = vmatprep.subr.bf16.mxu0 0
  %112 = vmatpush1.bf16.msra.mxu0 %v73
  %113 = vmatprep.subr.bf16.mxu0 0
  %114 = vmatpush1.bf16.msra.mxu0 %v72
  %115 = vmatprep.subr.bf16.mxu0 0
  %116 = vmatpush1.bf16.msra.mxu0 %v71
  %117 = vmatprep.subr.bf16.mxu0 0
  %118 = vmatpush1.bf16.msra.mxu0 %v70
  %119 = vmatprep.subr.bf16.mxu0 0
  %120 = vmatpush2.bf16.msra.mxu0 0
  %121 = vmatprep.subr.bf16.mxu0 0
  %122 = vmatpush2.bf16.msra.mxu0 0
  %123 = vmatprep.subr.bf16.mxu0 0
  %124 = vmatpush2.bf16.msra.mxu0 0
  %125 = vmatprep.subr.bf16.mxu0 0
  %126 = vmatpush2.bf16.msra.mxu0 0
  %127 = vmatprep.subr.bf16.mxu0 0
  %128 = vmatpush2.bf16.msra.mxu0 0
  %129 = vmatprep.subr.bf16.mxu0 0
  %130 = vmatpush2.bf16.msra.mxu0 0
  %131 = vmatprep.subr.bf16.mxu0 0
  %132 = vmatpush2.bf16.msra.mxu0 0
  %133 = vmatprep.subr.bf16.mxu0 0
  %134 = vmatpush2.bf16.msra.mxu0 0
  %135 = vmatprep.mubr.bf16.mxu0 0
  %136 = vmatmul.mubr.bf16.gmra.mxu0 %v80
  %v137 = vpop.f32.mrf.mxu0
  %v138 = vadd.f32 %v52, %v137
  %v139 = vpop.f32.mrf.mxu0
  %v140 = vpop.f32.mrf.mxu0
  %v141 = vadd.f32 %v52, %v140
  %v142 = vpop.f32.mrf.mxu0
  %143 = vmatprep.mubr.bf16.mxu0 0
  %144 = vmatmul.mubr.bf16.gmra.mxu0 %v83
  %v145 = vpop.f32.mrf.mxu0
  %v146 = vadd.f32 %v52, %v145
  %v147 = vpop.f32.mrf.mxu0
  %v148 = vpop.f32.mrf.mxu0
  %v149 = vadd.f32 %v52, %v148
  %v150 = vpop.f32.mrf.mxu0
  %151 = vmatprep.mubr.bf16.mxu0 0
  %152 = vmatmul.mubr.bf16.gmra.mxu0 %v86
  %v153 = vpop.f32.mrf.mxu0
  %v154 = vadd.f32 %v52, %v153
  %v155 = vpop.f32.mrf.mxu0
  %v156 = vpop.f32.mrf.mxu0
  %v157 = vadd.f32 %v52, %v156
  %v158 = vpop.f32.mrf.mxu0
  %159 = vmatprep.mubr.bf16.mxu0 0
  %160 = vmatmul.mubr.bf16.gmra.mxu0 %v89
  %v161 = vpop.f32.mrf.mxu0
  %v162 = vadd.f32 %v52, %v161
  %v163 = vpop.f32.mrf.mxu0
  %v164 = vpop.f32.mrf.mxu0
  %v165 = vadd.f32 %v52, %v164
  %v166 = vpop.f32.mrf.mxu0
  %167 = vmatprep.mubr.bf16.mxu0 0
  %168 = vmatmul.mubr.bf16.gmra.mxu0 %v92
  %v169 = vpop.f32.mrf.mxu0
  %v170 = vadd.f32 %v52, %v169
  %v171 = vpop.f32.mrf.mxu0
  %v172 = vpop.f32.mrf.mxu0
  %v173 = vadd.f32 %v52, %v172
  %v174 = vpop.f32.mrf.mxu0
  %175 = vmatprep.mubr.bf16.mxu0 0
  %176 = vmatmul.mubr.bf16.gmra.mxu0 %v95
  %v177 = vpop.f32.mrf.mxu0
  %v178 = vadd.f32 %v52, %v177
  %v179 = vpop.f32.mrf.mxu0
  %v180 = vpop.f32.mrf.mxu0
  %v181 = vadd.f32 %v52, %v180
  %v182 = vpop.f32.mrf.mxu0
  %183 = vmatprep.mubr.bf16.mxu0 0
  %184 = vmatmul.mubr.bf16.gmra.mxu0 %v98
  %v185 = vpop.f32.mrf.mxu0
  %v186 = vadd.f32 %v52, %v185
  %v187 = vpop.f32.mrf.mxu0
  %v188 = vpop.f32.mrf.mxu0
  %v189 = vadd.f32 %v52, %v188
  %v190 = vpop.f32.mrf.mxu0
  %191 = vmatprep.mubr.bf16.mxu0 0
  %192 = vmatmul.mubr.bf16.gmra.mxu0 %v101
  %v193 = vpop.f32.mrf.mxu0
  %v194 = vadd.f32 %v52, %v193
  %v195 = vpop.f32.mrf.mxu0
  %v196 = vpop.f32.mrf.mxu0
  %v197 = vadd.f32 %v52, %v196
  %v198 = vpop.f32.mrf.mxu0
  %199 = vdwg.mxu0
  %200 = vst.msk [vmem:[%s3] sm:$0xff] %vm78, %v138
  %201 = vst.msk [vmem:[%s3 + $0x8] sm:$0xff] %vm78, %v141
  %202 = vst.msk [vmem:[%s3 + $0x10] sm:$0xff] %vm78, %v146
  %203 = vst.msk [vmem:[%s3 + $0x18] sm:$0xff] %vm78, %v149
  %204 = vst.msk [vmem:[%s3 + $0x20] sm:$0xff] %vm78, %v154
  %205 = vst.msk [vmem:[%s3 + $0x28] sm:$0xff] %vm78, %v157
  %206 = vst.msk [vmem:[%s3 + $0x30] sm:$0xff] %vm78, %v162
  %207 = vst.msk [vmem:[%s3 + $0x38] sm:$0xff] %vm78, %v165
  %208 = vst.msk [vmem:[%s3 + $0x40] sm:$0xff] %vm78, %v170
  %209 = vst.msk [vmem:[%s3 + $0x48] sm:$0xff] %vm78, %v173
  %210 = vst.msk [vmem:[%s3 + $0x50] sm:$0xff] %vm78, %v178
  %211 = vst.msk [vmem:[%s3 + $0x58] sm:$0xff] %vm78, %v181
  %212 = vst.msk [vmem:[%s3 + $0x60] sm:$0xff] %vm78, %v186
  %213 = vst.msk [vmem:[%s3 + $0x68] sm:$0xff] %vm78, %v189
  %214 = vst.msk [vmem:[%s3 + $0x70] sm:$0xff] %vm78, %v194
  %215 = vst.msk [vmem:[%s3 + $0x78] sm:$0xff] %vm78, %v197
  // Predicated region
  $region14: #{tpu_custom_call.1} parent=0 // pred_check
    _
  $region15: #{tpu_custom_call.1} parent=0 // pred_check_branch
    %217 = sbr.rel (0) target = $region17
  $region16: #{tpu_custom_call.1} parent=0 // pred_region
    _
  $region17: #{tpu_custom_call.1} parent=0 // pred_fallthru
    _
  // Predicated region
  $region18: #{tpu_custom_call.1} parent=0 // pred_check
    _
  $region19: #{tpu_custom_call.1} parent=0 // pred_check_branch
    %219 = sbr.rel (0) target = $region21
  $region20: #{tpu_custom_call.1} parent=0 // pred_region
    _
  $region21: #{tpu_custom_call.1} parent=0 // pred_fallthru
    _

</llo_original>
